<compile_context>
chip_gen: v5e
topology: v5e:2x2
jax: 0.10.0
libtpu: 0.0.40
codegen_flags: <defaults>
</compile_context>

<pallas_src>
import functools
import math

import numpy as np

import jax
import jax.numpy as jnp
from jax.experimental import pallas as pl
from jax.experimental.pallas import tpu as pltpu

SEQ_LENGTH = 4
N_EMBD = 6
N_BASE = 10000.0

_LANE = 128
_SUBLANE = 8


def _pos_enc_kernel(inv_ref, off_ref, o_ref, *, rows_per_slab_row):
    """Writes one (TM, WC) tile of the positional-encoding slab.

    The slab is the (S, D) table viewed as (S // r, r*D) with
    r = rows_per_slab_row (r == 1 is the direct layout).  Slab element (s, c)
    holds table element (k, col) with k = s*r + c//D, col = c%D.  The column
    vectors carry:
      inv_ref[0, c] = n ** (-2*(col//2) / D)
      off_ref[0, c] = (c // D) * inv_ref[0, c] + (col % 2) * pi/2
    so angle = (s*r) * inv + off, and cos on odd columns is sin(angle + pi/2).
    """
    tm, _ = o_ref.shape
    inv_denom = inv_ref[...]                                    # (1, WC)
    offset = off_ref[...]                                       # (1, WC)

    row0 = pl.program_id(0) * tm
    k_base = ((jax.lax.broadcasted_iota(jnp.int32, (tm, 1), 0) + row0)
              * rows_per_slab_row).astype(jnp.float32)          # (TM, 1)

    # One FMA + one sin per element; no divide, no select, no per-element exp.
    o_ref[...] = jnp.sin(k_base * inv_denom + offset).astype(o_ref.dtype)


def _choose_slab(seq_length, n_embd):
    """Pick a lane-dense view: returns (slab_rows, slab_cols, rows_per_slab_row)."""
    if n_embd % _LANE == 0:
        return seq_length, n_embd, 1
    r = _LANE // math.gcd(n_embd, _LANE)   # smallest r with r*D % 128 == 0
    if r > 1 and seq_length % r == 0:
        return seq_length // r, r * n_embd, r
    return seq_length, n_embd, 1           # small/awkward: direct layout


def _pick_row_tile(slab_rows, slab_cols, itemsize):
    """Row tile for the slab, sized from a per-buffer byte budget.

    The double-buffered output is the only array living in VMEM; keep the tile
    a multiple of 8 rows.  When everything would fit in one block, split into
    >= 2 grid steps anyway so the "parallel" axis shards across v7x's two TCs.
    """
    if slab_rows <= _SUBLANE:
        return slab_rows                                  # full-array block
    budget_per_buf = 8 * 1024 * 1024                      # 16 MiB double-buffered
    tm = budget_per_buf // max(1, slab_cols * itemsize)
    tm = max(_SUBLANE, (min(tm, slab_rows) // _SUBLANE) * _SUBLANE)
    if tm >= slab_rows and slab_rows >= 2 * _SUBLANE:
        half = (slab_rows + 1) // 2
        tm = ((half + _SUBLANE - 1) // _SUBLANE) * _SUBLANE
        tm = min(tm, (slab_rows // _SUBLANE) * _SUBLANE)
    return tm


def _column_tables(n_embd, rows_per_slab_row, n=N_BASE):
    """Host-side (float64) column vectors for one slab row, rounded to f32."""
    d, r = n_embd, rows_per_slab_row
    c = np.arange(r * d)
    col = c % d
    grp = c // d                                          # which packed row
    half = col // 2
    inv_denom = 1.0 / np.power(float(n), 2.0 * half / float(d))
    offset = grp * inv_denom + (col % 2) * (math.pi / 2.0)
    return (jnp.asarray(inv_denom[None, :], dtype=jnp.float32),
            jnp.asarray(offset[None, :], dtype=jnp.float32))


def positional_encoding_aae(seq_length=SEQ_LENGTH, n_embd=N_EMBD,
                            dtype=jnp.float32):
    """Builds the (seq_length, n_embd) sinusoidal positional-encoding table."""
    assert n_embd % 2 == 0, "n_embd must be even (matches the PyTorch module)"
    itemsize = jnp.dtype(dtype).itemsize
    slab_rows, slab_cols, r = _choose_slab(seq_length, n_embd)
    tm = _pick_row_tile(slab_rows, slab_cols, itemsize)
    grid = (pl.cdiv(slab_rows, tm),)
    tile_bytes = tm * slab_cols * itemsize
    vmem_limit = int(min(max(2 * tile_bytes + (4 << 20), 32 << 20), 48 << 20))

    inv_denom, offset = _column_tables(n_embd, r)
    kernel = functools.partial(_pos_enc_kernel, rows_per_slab_row=r)
    slab = pl.pallas_call(
        kernel,
        out_shape=jax.ShapeDtypeStruct((slab_rows, slab_cols), dtype),
        grid=grid,
        in_specs=[pl.BlockSpec((1, slab_cols), lambda i: (0, 0)),
                  pl.BlockSpec((1, slab_cols), lambda i: (0, 0))],
        out_specs=pl.BlockSpec((tm, slab_cols), lambda i: (i, 0)),
        compiler_params=pltpu.CompilerParams(
            dimension_semantics=("parallel",),
            vmem_limit_bytes=vmem_limit),
    )(inv_denom, offset)
    if r > 1:
        slab = slab.reshape(seq_length, n_embd)   # same flat order: free
    return slab


class PositionalEncodingAAE:
    """Mirrors the PyTorch module: table built once at init, forward() returns it."""

    def __init__(self, seq_length=SEQ_LENGTH, n_embd=N_EMBD):
        self.pos_embds = jax.block_until_ready(
            positional_encoding_aae(seq_length, n_embd))

    def forward(self):
        return self.pos_embds


def _reference(seq_length, n_embd, n=N_BASE):
    """Pure-JAX reference mirroring the PyTorch __init__ exactly."""
    k = jnp.arange(seq_length, dtype=jnp.float32).reshape(seq_length, 1)
    i = jnp.arange(n_embd // 2, dtype=jnp.float32)
    denominator = jnp.power(jnp.float32(n), 2.0 * i / jnp.float32(n_embd))
    pe = jnp.zeros((seq_length, n_embd), dtype=jnp.float32)
    pe = pe.at[:, 0::2].set(jnp.sin(k / denominator))
    pe = pe.at[:, 1::2].set(jnp.cos(k / denominator))
    return pe


if __name__ == "__main__":
    # forward() takes no tensor inputs; key kept for convention only.
    _ = jax.random.PRNGKey(0)

    # 1) Module-sized case (matches the PyTorch spec: seq_length=4, n_embd=6).
    mod = PositionalEncodingAAE(SEQ_LENGTH, N_EMBD)
    out = jax.block_until_ready(mod.forward())
    ref = _reference(SEQ_LENGTH, N_EMBD)
    assert out.shape == (SEQ_LENGTH, N_EMBD), out.shape
    assert out.dtype == jnp.float32, out.dtype
    assert jnp.allclose(out, ref, atol=1e-5, rtol=1e-5)

    # 2) Lane-dense path: n_embd=6 packs 64 rows per slab row -> (2, 384) slab.
    out2 = jax.block_until_ready(positional_encoding_aae(128, 6))
    ref2 = _reference(128, 6)
    assert out2.shape == (128, 6), out2.shape
    assert jnp.allclose(out2, ref2, atol=1e-3, rtol=1e-3)

    # 3) Direct layout (D % 128 == 0), >= 2-step "parallel" grid via cdiv with
    #    a clipped partial last block (264 rows, tile 136).
    out3 = jax.block_until_ready(positional_encoding_aae(264, 128))
    ref3 = _reference(264, 128)
    assert out3.shape == (264, 128), out3.shape
    assert jnp.allclose(out3, ref3, atol=1e-3, rtol=1e-3)

    print("KERNEL_OK")
</pallas_src>

<mosaic_0001>
module attributes {stable_mosaic.version = 11 : i64} {
  func.func @_pos_enc_kernel(%arg0: i32, %arg1: memref<1x6xf32, #tpu.memory_space<vmem>>, %arg2: memref<1x6xf32, #tpu.memory_space<vmem>>, %arg3: memref<4x6xf32, #tpu.memory_space<vmem>>) attributes {dimension_semantics = [#tpu.dimension_semantics<parallel>], iteration_bounds = array<i64: 1>, scalar_prefetch = 0 : i64, scratch_operands = 0 : i64, tpu.core_type = #tpu.core_type<tc>, window_params = [{pipeline_mode = #tpu.pipeline_mode<synchronous>, transform_indices = @transform_0, window_bounds = array<i64: 1, 6>}, {pipeline_mode = #tpu.pipeline_mode<synchronous>, transform_indices = @transform_1, window_bounds = array<i64: 1, 6>}, {transform_indices = @transform_2, window_bounds = array<i64: 4, 6>}]} {
    %c0 = arith.constant 0 : index
    %c0_0 = arith.constant 0 : index
    %0 = vector.load %arg1[%c0, %c0_0] : memref<1x6xf32, #tpu.memory_space<vmem>>, vector<1x6xf32>
    %c0_1 = arith.constant 0 : index
    %c0_2 = arith.constant 0 : index
    %1 = vector.load %arg2[%c0_1, %c0_2] : memref<1x6xf32, #tpu.memory_space<vmem>>, vector<1x6xf32>
    %c4_i32 = arith.constant 4 : i32
    %2 = arith.muli %arg0, %c4_i32 : i32
    %3 = tpu.iota {dimensions = array<i32: 0>} : vector<4x1xi32>
    %4 = vector.broadcast %2 : i32 to vector<4x1xi32>
    %5 = arith.addi %3, %4 : vector<4x1xi32>
    %c1_i32 = arith.constant 1 : i32
    %6 = vector.broadcast %c1_i32 : i32 to vector<4x1xi32>
    %7 = arith.muli %5, %6 : vector<4x1xi32>
    %8 = arith.sitofp %7 : vector<4x1xi32> to vector<4x1xf32>
    %9 = vector.broadcast %8 : vector<4x1xf32> to vector<4x6xf32>
    %10 = vector.broadcast %0 : vector<1x6xf32> to vector<4x6xf32>
    %11 = arith.mulf %9, %10 : vector<4x6xf32>
    %12 = vector.broadcast %1 : vector<1x6xf32> to vector<4x6xf32>
    %13 = arith.addf %11, %12 : vector<4x6xf32>
    %14 = math.sin %13 : vector<4x6xf32>
    %c0_3 = arith.constant 0 : index
    %c0_4 = arith.constant 0 : index
    %15 = vector.load %arg3[%c0_3, %c0_4] : memref<4x6xf32, #tpu.memory_space<vmem>>, vector<4x6xf32>
    tpu.vector_store %arg3[%c0_3, %c0_4], %14 {strides = array<i32>} : memref<4x6xf32, #tpu.memory_space<vmem>>, vector<4x6xf32>,
    return
  }
  func.func @transform_0(%arg0: i32) -> (i32, i32) {
    %c0_i32 = arith.constant 0 : i32
    %c0_i32_0 = arith.constant 0 : i32
    %c0_i32_1 = arith.constant 0 : i32
    return %c0_i32, %c0_i32_0 : i32, i32
  }
  func.func @transform_1(%arg0: i32) -> (i32, i32) {
    %c0_i32 = arith.constant 0 : i32
    %c0_i32_0 = arith.constant 0 : i32
    %c0_i32_1 = arith.constant 0 : i32
    return %c0_i32, %c0_i32_0 : i32, i32
  }
  func.func @transform_2(%arg0: i32) -> (i32, i32) {
    %c0_i32 = arith.constant 0 : i32
    %c0_i32_0 = arith.constant 0 : i32
    return %arg0, %c0_i32 : i32, i32
  }
}

</mosaic_0001>

<llo_original>
// kernel: tpu_custom_call.1
$region0: #{tpu_custom_call.1}
  #allocation0 [shape = 'u32[]', space=smem, size = 0x4, offset = 0x4, fixed_abs, tag = 'smem constant byte address 0x4 - core index']
  #allocation1 [shape = 'u32[72,128]{1,0:T(1,128)}', space=vmem, size = 0x9000, scoped, tag = 'internal scratch']
  %s0 = inlined_call_operand.hbm [shape: f32[1,6], index: 0, kind: input, shape index: {}]
  %s1 = inlined_call_operand.hbm [shape: f32[1,6], index: 1, kind: input, shape index: {}]
  %s2 = inlined_call_operand.hbm [shape: f32[4,6], index: 2, kind: output, shape index: {}]
  %s3 = sld [smem:[#allocation0]]
  $region26: #{tpu_custom_call.1} parent=0
    _
  %s5 = ssub.s32 1, %s3
  %s6 = scalar_select 0, %s5, %s3
  $region1: #{tpu_custom_call.1} parent=0
    #allocation2 [shape = 'u8[512]{0}', space=vmem, size = 0x400, scoped, tag = 'input window, operand 0, single buffered']
    #allocation3 [shape = 's32[1]{0}', space=sflag, size = 0x4, scoped, tag = 'scoped memory for tpu_custom_call.1']
    #allocation4 [shape = 's32[1]{0}', space=sflag, size = 0x4, scoped, tag = 'scoped memory for tpu_custom_call.1']
    #allocation5 [shape = 'u8[512]{0}', space=vmem, size = 0x400, scoped, tag = 'input window, operand 1, single buffered']
    #allocation6 [shape = 's32[1]{0}', space=sflag, size = 0x4, scoped, tag = 'scoped memory for tpu_custom_call.1']
    #allocation7 [shape = 'u8[2048]{0}', space=vmem, size = 0x800, scoped, tag = 'output window, operand 0, single buffered']
    %7 = vsyncpa [#allocation3], 0
    %8 = vsyncpa [#allocation6], 0
    %9 = vsyncpa [#allocation4], 0
    // Predicated region
    $region2: #{tpu_custom_call.1} parent=1 // pred_check
      _
    $region3: #{tpu_custom_call.1} parent=1 // pred_check_branch
      %11 = sbr.rel (0) target = $region5
    $region4: #{tpu_custom_call.1} parent=1 // pred_region
      %13 = vsyncadd [#allocation3], 0
      %s15 = sshll.u32 %s0, 4
      %s16 = int_to_ptr.hbm [resolvable:$true] %s15
      %s17 = sshll.u32 [#allocation2], 4
      %s18 = int_to_ptr.vmem [resolvable:$true] %s17
      %20 = dma.hbm_to_vmem [thread:$0]  %s16, 16, %s18, [#allocation3]
    $region5: #{tpu_custom_call.1} parent=1 // pred_fallthru
      _
    // Predicated region
    $region6: #{tpu_custom_call.1} parent=1 // pred_check
      _
    $region7: #{tpu_custom_call.1} parent=1 // pred_check_branch
      %22 = sbr.rel (0) target = $region9
    $region8: #{tpu_custom_call.1} parent=1 // pred_region
      %24 = vsyncadd [#allocation6], 0
      %s26 = sshll.u32 %s1, 4
      %s27 = int_to_ptr.hbm [resolvable:$true] %s26
      %s28 = sshll.u32 [#allocation5], 4
      %s29 = int_to_ptr.vmem [resolvable:$true] %s28
      %31 = dma.hbm_to_vmem [thread:$0]  %s27, 16, %s29, [#allocation6]
    $region9: #{tpu_custom_call.1} parent=1 // pred_fallthru
      _
    // Predicated region
    $region10: #{tpu_custom_call.1} parent=1 // pred_check
      _
    $region11: #{tpu_custom_call.1} parent=1 // pred_check_branch
      %33 = sbr.rel (0) target = $region13
    $region12: #{tpu_custom_call.1} parent=1 // pred_region
      %35 = dma.done [#allocation3], 16
    $region13: #{tpu_custom_call.1} parent=1 // pred_fallthru
      _
    // Predicated region
    $region14: #{tpu_custom_call.1} parent=1 // pred_check
      _
    $region15: #{tpu_custom_call.1} parent=1 // pred_check_branch
      %37 = sbr.rel (0) target = $region17
    $region16: #{tpu_custom_call.1} parent=1 // pred_region
      %39 = dma.done [#allocation6], 16
    $region17: #{tpu_custom_call.1} parent=1 // pred_fallthru
      _
    %v40 = vld [vmem:[#allocation2] sm:$0x1]
    %v41 = vld [vmem:[#allocation5] sm:$0x1]
    %s42 = smul.u32 0, 4
    %v43 = vlaneseq
    %v44 = vshrl.u32 %v43, 7
    %v45 = vstv %s42
    %v46 = vadd.s32 %v44, %v45
    %v47 = vcvt.s32.f32 %v46
    %v49 = vperm.slane %v40, 0
    %v51 = vmul.f32 %v47, %v49
    %v53 = vperm.slane %v41, 0
    %v55 = vadd.f32 %v51, %v53
    %v56 = vand.u32 2147483647, %v55
    %vm57 = vcmp.le.f32.partialorder %v56, 0.7853982
    %vm58 = vcmp.lt.s32.totalorder %v55, 0
    %v59 = vand.u32 %v55, 2139095040
    %v60 = vshrl.u32 %v59, 23
    %v61 = vsub.s32 %v60, 127
    %v62 = vand.u32 2147483647, %v55
    %v63 = vand.u32 %v62, 8388607
    %v64 = vor.u32 %v63, 8388608
    %v65 = vsub.s32 0, %v64
    %v66 = vadd.s32 %v61, 1
    %vm67 = vcmp.gt.s32.totalorder %v66, 0
    %v68 = vsel %vm67, %v66, 0
    %v69 = vshrl.u32 %v68, 5
    %v70 = vand.u32 %v68, 31
    %v71 = vsub.s32 32, %v70
    %v72 = vshrl.u32 683565275, %v71
    %v73 = vshll.u32 683565275, %v70
    %v74 = vshrl.u32 2475754826, %v71
    %v75 = vor.u32 %v73, %v74
    %v76 = vshll.u32 2475754826, %v70
    %v77 = vshrl.u32 2131351028, %v71
    %v78 = vor.u32 %v76, %v77
    %v79 = vshll.u32 2131351028, %v70
    %v80 = vshrl.u32 2102212464, %v71
    %v81 = vor.u32 %v79, %v80
    %v82 = vshll.u32 2102212464, %v70
    %v83 = vshrl.u32 920167782, %v71
    %v84 = vor.u32 %v82, %v83
    %v85 = vshll.u32 920167782, %v70
    %v86 = vshrl.u32 1326507024, %v71
    %v87 = vor.u32 %v85, %v86
    %vm88 = vcmp.lt.s32.totalorder %v69, 1
    %vm89 = vcmp.lt.s32.totalorder %v69, 2
    %vm90 = vcmp.lt.s32.totalorder %v69, 3
    %vm91 = vcmp.lt.s32.totalorder %v69, 4
    %v92 = vsel %vm88, %v72, %v75
    %v93 = vsel %vm91, %v81, 2102212464
    %v94 = vsel %vm90, %v78, %v93
    %v95 = vsel %vm89, %v92, %v94
    %v96 = vsel %vm88, %v75, %v78
    %v97 = vsel %vm91, %v84, 920167782
    %v98 = vsel %vm90, %v81, %v97
    %v99 = vsel %vm89, %v96, %v98
    %v100 = vsel %vm88, %v78, %v81
    %v101 = vsel %vm91, %v87, 1326507024
    %v102 = vsel %vm90, %v84, %v101
    %v103 = vsel %vm89, %v100, %v102
    %v104 = vshll.u32 %v64, 8
    %v105 = vand.u32 %v104, 65535
    %v106 = vshrl.u32 %v104, 16
    %v107 = vand.u32 %v103, 65535
    %v108 = vshrl.u32 %v103, 16
    %v109 = vmul.u32 %v105, %v107
    %v110 = vmul.u32 %v105, %v108
    %v111 = vmul.u32 %v106, %v107
    %v112 = vmul.u32 %v106, %v108
    %v113 = vshll.u32 %v110, 16
    %v114 = vshrl.u32 %v110, 16
    %v115 = vshll.u32 %v111, 16
    %v116 = vshrl.u32 %v111, 16
    %vm117 = vc.u32 %v109, %v113
    %v118 = vsel %vm117, 1, 0
    %v119 = vadd.s32 %v109, %v113
    %v120 = vadd.s32 %v112, %v118
    %vm121 = vc.u32 %v119, %v115
    %v122 = vsel %vm121, 1, 0
    %v123 = vadd.s32 %v119, %v115
    %v124 = vadd.s32 %v120, %v122
    %v125 = vadd.s32 %v124, %v114
    %v126 = vadd.s32 %v125, %v116
    %v127 = vand.u32 %v104, 65535
    %v128 = vshrl.u32 %v104, 16
    %v129 = vand.u32 %v99, 65535
    %v130 = vshrl.u32 %v99, 16
    %v131 = vmul.u32 %v127, %v129
    %v132 = vmul.u32 %v127, %v130
    %v133 = vmul.u32 %v128, %v129
    %v134 = vmul.u32 %v128, %v130
    %v135 = vshll.u32 %v132, 16
    %v136 = vshrl.u32 %v132, 16
    %v137 = vshll.u32 %v133, 16
    %v138 = vshrl.u32 %v133, 16
    %vm139 = vc.u32 %v131, %v135
    %v140 = vsel %vm139, 1, 0
    %v141 = vadd.s32 %v131, %v135
    %v142 = vadd.s32 %v134, %v140
    %vm143 = vc.u32 %v141, %v137
    %v144 = vsel %vm143, 1, 0
    %v145 = vadd.s32 %v141, %v137
    %v146 = vadd.s32 %v142, %v144
    %v147 = vadd.s32 %v146, %v136
    %v148 = vadd.s32 %v147, %v138
    %v149 = vmul.u32 %v104, %v95
    %v150 = vadd.s32 %v126, %v145
    %vm151 = vc.u32 %v126, %v145
    %v152 = vadd.s32 %v148, 1
    %v153 = vsel %vm151, %v152, %v148
    %v154 = vadd.s32 %v149, %v153
    %v155 = vadd.s32 %v154, 536870912
    %v156 = vshrl.u32 %v155, 30
    %v157 = vshll.u32 %v156, 30
    %v158 = vsub.s32 %v154, %v157
    %vm159 = vcmp.lt.s32.totalorder %v158, 0
    %v160 = vsub.s32 0, %v158
    %v161 = vsel %vm159, %v160, %v158
    %v162 = vclz %v161
    %v163 = vsub.s32 %v162, 2
    %vm164 = vcmp.gt.s32.totalorder 0, %v163
    %v165 = vsel %vm164, 0, %v163
    %v166 = vsub.s32 32, %v165
    %v167 = vshll.u32 %v158, %v165
    %v168 = vshrl.u32 %v150, %v166
    %v169 = vor.u32 %v167, %v168
    %v170 = vsub.s32 4294967266, %v165
    %v171 = vadd.s32 %v170, 127
    %v172 = vshll.u32 %v171, 23
    %v173 = vor.u32 4788187, %v172
    %v174 = vand.u32 2147483647, %v173
    %v176 = vcvt.s32.f32 %v169
    %v177 = vmul.f32 %v176, %v174
    %v178 = vxor.u32 %v177, 2147483648
    %v179 = vsel %vm58, %v178, %v177
    %v180 = vsub.s32 4, %v156
    %v181 = vsel %vm58, %v180, %v156
    %v182 = vsel %vm57, %v55, %v179
    %v183 = vsel %vm57, 0, %v181
    %v184 = vmul.f32 %v182, %v182
    %v185 = vmul.f32 %v184, -0.001358992
    %v186 = vadd.f32 %v185, 0.041655596
    %v187 = vmul.f32 %v184, %v186
    %v188 = vadd.f32 %v187, -0.4999988
    %v189 = vmul.f32 %v184, %v188
    %v190 = vadd.f32 1.0, %v189
    %v191 = vmul.f32 %v182, %v182
    %v192 = vmul.f32 %v191, -0.00019511016
    %v193 = vadd.f32 %v192, 0.008332121
    %v194 = vmul.f32 %v191, %v193
    %v195 = vadd.f32 %v194, -0.16666654
    %v196 = vmul.f32 %v191, %v195
    %v197 = vadd.f32 %v196, 1.0
    %v198 = vmul.f32 %v197, %v182
    %vm199 = vweird.f32 %v55
    %v200 = vadd.s32 %v183, 3
    %v201 = vand.u32 %v200, 3
    %vm202 = vcmp.lt.s32.totalorder %v201, 2
    %vm203 = vcmp.eq.s32.totalorder %v201, 0
    %v204 = vxor.u32 %v198, 2147483648
    %v205 = vsel %vm203, %v190, %v204
    %vm206 = vcmp.eq.s32.totalorder %v201, 2
    %v207 = vxor.u32 %v190, 2147483648
    %v208 = vsel %vm206, %v207, %v198
    %v209 = vsel %vm202, %v205, %v208
    %v210 = vsel %vm199, nan, %v209
    %vm211 = vcmask 44032
    %212 = vst.msk [vmem:[#allocation7] sm:$0xf] %vm211, %v210
    // Predicated region
    $region18: #{tpu_custom_call.1} parent=1 // pred_check
      _
    $region19: #{tpu_custom_call.1} parent=1 // pred_check_branch
      %214 = sbr.rel (0) target = $region21
    $region20: #{tpu_custom_call.1} parent=1 // pred_region
      %216 = vsyncadd [#allocation4], 0
      %s218 = sshll.u32 [#allocation7], 4
      %s219 = int_to_ptr.vmem [resolvable:$true] %s218
      %s220 = sshll.u32 %s2, 4
      %s221 = int_to_ptr.hbm [resolvable:$true] %s220
      %223 = dma.vmem_to_hbm [thread:$0]  %s219, 64, %s221, [#allocation4]
    $region21: #{tpu_custom_call.1} parent=1 // pred_fallthru
      _
    // Predicated region
    $region22: #{tpu_custom_call.1} parent=1 // pred_check
      _
    $region23: #{tpu_custom_call.1} parent=1 // pred_check_branch
      %225 = sbr.rel (0) target = $region25
    $region24: #{tpu_custom_call.1} parent=1 // pred_region
      %227 = dma.done [#allocation4], 64
    $region25: #{tpu_custom_call.1} parent=1 // pred_fallthru
      _
    %228 = vsyncpa [#allocation3], 1
    %229 = vsyncpa [#allocation6], 1
    %230 = vsyncpa [#allocation4], 1

</llo_original>
